<compile_context>
chip_gen: v6e
topology: v6e:2x2x1
jax: 0.10.0
libtpu: 0.0.40
codegen_flags: <defaults>
</compile_context>

<pallas_src>
import jax
import jax.numpy as jnp
from jax.experimental import pallas as pl
from jax.experimental.pallas import tpu as pltpu


def _skip_mlp_kernel(x_ref, c_ref, w1x_ref, w1c_ref, b1_ref, w2_ref, b2_ref,
                     o_ref):
    x = x_ref[...]                              # (tb, Dx), f32 skip path
    c = c_ref[...]                              # (tb, Dc)

    # Layer 1: split-weight contraction (equivalent to cat(x, cond) @ W1).
    h = (jnp.dot(x, w1x_ref[...], preferred_element_type=jnp.float32)
         + jnp.dot(c, w1c_ref[...], preferred_element_type=jnp.float32)
         + b1_ref[...])
    h = jnp.maximum(h, 0.0)                     # ReLU (VPU)

    # Layer 2.
    y = jnp.dot(h, w2_ref[...], preferred_element_type=jnp.float32) + b2_ref[...]

    # Skip connection.
    o_ref[...] = (x + y).astype(o_ref.dtype)


def skip_connection_forward(x, cond, params, *, block_rows=4096):
    """x: (B, Dx), cond: (B, Dc) -> (B, Dx) = x + MLP(cat(x, cond))."""
    B, Dx = x.shape
    Bc, Dc = cond.shape
    assert B == Bc
    H = params["w1"].shape[1]
    assert params["w1"].shape[0] == Dx + Dc

    f32 = jnp.float32
    w1 = params["w1"].astype(f32)
    w1x = w1[:Dx]                               # (Dx, H)
    w1c = w1[Dx:]                               # (Dc, H)
    b1 = params["b1"].reshape(1, H).astype(f32)
    w2 = params["w2"].astype(f32)               # (H, Dx)
    b2 = params["b2"].reshape(1, Dx).astype(f32)
    x = x.astype(f32)
    cond = cond.astype(f32)

    # Tile choice: large tiles amortize the ~0.35us per-grid-step overhead,
    # but keep >= 2 grid steps so the batch axis can shard across both v7x
    # TensorCores.  Rows are skinny so even 4096-row tiles are only a few MB
    # double-buffered (safe for every chip's scoped VMEM default).
    if B <= 8:
        tb = B
    else:
        n_steps = max(2, pl.cdiv(B, block_rows))
        tb = min(B, ((pl.cdiv(B, n_steps) + 7) // 8) * 8)
    grid = (pl.cdiv(B, tb),)

    flops = 2 * B * (Dx * H + Dc * H + H * Dx)
    bytes_accessed = (
        x.size * 4 + cond.size * 4 + B * Dx * 4      # activations in/out
        + (w1x.size + w1c.size + w2.size) * 4        # weights
        + (b1.size + b2.size) * 4)                   # biases

    return pl.pallas_call(
        _skip_mlp_kernel,
        out_shape=jax.ShapeDtypeStruct((B, Dx), x.dtype),
        grid=grid,
        in_specs=[
            pl.BlockSpec((tb, Dx), lambda i: (i, 0)),   # x tile (skip + matmul)
            pl.BlockSpec((tb, Dc), lambda i: (i, 0)),   # cond tile
            pl.BlockSpec((Dx, H), lambda i: (0, 0)),    # W1[:Dx]  (resident)
            pl.BlockSpec((Dc, H), lambda i: (0, 0)),    # W1[Dx:]  (resident)
            pl.BlockSpec((1, H), lambda i: (0, 0)),     # b1
            pl.BlockSpec((H, Dx), lambda i: (0, 0)),    # W2
            pl.BlockSpec((1, Dx), lambda i: (0, 0)),    # b2
        ],
        out_specs=pl.BlockSpec((tb, Dx), lambda i: (i, 0)),
        compiler_params=pltpu.CompilerParams(
            dimension_semantics=("parallel",)),         # shard batch over TCs
        cost_estimate=pl.CostEstimate(
            flops=flops, transcendentals=0, bytes_accessed=bytes_accessed),
    )(x, cond, w1x, w1c, b1, w2, b2)


def make_params(key, dim_x, dim_cond, hidden, dtype=jnp.float32):
    """Deterministic Linear-style init (uniform, like torch.nn.Linear)."""
    k1, k2, k3, k4 = jax.random.split(key, 4)
    fan_in1 = dim_x + dim_cond
    lim1 = 1.0 / jnp.sqrt(fan_in1)
    w1 = jax.random.uniform(k1, (fan_in1, hidden), dtype, -lim1, lim1)
    b1 = jax.random.uniform(k2, (1, hidden), dtype, -lim1, lim1)
    lim2 = 1.0 / jnp.sqrt(hidden)
    w2 = jax.random.uniform(k3, (hidden, dim_x), dtype, -lim2, lim2)
    b2 = jax.random.uniform(k4, (1, dim_x), dtype, -lim2, lim2)
    return {"w1": w1, "b1": b1, "w2": w2, "b2": b2}


def reference_forward(x, cond, params):
    """Pure-JAX f32 reference: x + inner(cat((x, cond), axis=1))."""
    h = jnp.concatenate([x, cond], axis=1) @ params["w1"] + params["b1"]
    h = jnp.maximum(h, 0.0)
    return x + (h @ params["w2"] + params["b2"])


if __name__ == "__main__":
    key = jax.random.PRNGKey(0)
    kx, kc, kp = jax.random.split(key, 3)

    B, Dx, Dc, H = 256, 32, 16, 64
    x = jax.random.normal(kx, (B, Dx), jnp.float32)
    cond = jax.random.normal(kc, (B, Dc), jnp.float32)
    params = make_params(kp, Dx, Dc, H)

    # Default tiling already clamps to a >=2-step grid (here tb=128, grid=(2,)),
    # exercising the pipelined / megacore-parallel path at this demo batch.
    out = skip_connection_forward(x, cond, params)
    out = jax.block_until_ready(out)

    ref = reference_forward(x, cond, params)
    assert out.shape == (B, Dx)
    # Full-f32 matmuls with f32 accumulation: tight tolerance vs reference.
    assert jnp.allclose(out, ref, atol=1e-5, rtol=1e-5), "mismatch vs reference"

    print("KERNEL_OK")
</pallas_src>

<mosaic_0001>
module attributes {stable_mosaic.version = 11 : i64} {
  func.func @_skip_mlp_kernel(%arg0: i32, %arg1: memref<128x32xf32, #tpu.memory_space<vmem>>, %arg2: memref<128x16xf32, #tpu.memory_space<vmem>>, %arg3: memref<32x64xf32, #tpu.memory_space<vmem>>, %arg4: memref<16x64xf32, #tpu.memory_space<vmem>>, %arg5: memref<1x64xf32, #tpu.memory_space<vmem>>, %arg6: memref<64x32xf32, #tpu.memory_space<vmem>>, %arg7: memref<1x32xf32, #tpu.memory_space<vmem>>, %arg8: memref<128x32xf32, #tpu.memory_space<vmem>>) attributes {dimension_semantics = [#tpu.dimension_semantics<parallel>], iteration_bounds = array<i64: 2>, scalar_prefetch = 0 : i64, scratch_operands = 0 : i64, tpu.core_type = #tpu.core_type<tc>, window_params = [{transform_indices = @transform_0, window_bounds = array<i64: 128, 32>}, {transform_indices = @transform_1, window_bounds = array<i64: 128, 16>}, {pipeline_mode = #tpu.pipeline_mode<synchronous>, transform_indices = @transform_2, window_bounds = array<i64: 32, 64>}, {pipeline_mode = #tpu.pipeline_mode<synchronous>, transform_indices = @transform_3, window_bounds = array<i64: 16, 64>}, {pipeline_mode = #tpu.pipeline_mode<synchronous>, transform_indices = @transform_4, window_bounds = array<i64: 1, 64>}, {pipeline_mode = #tpu.pipeline_mode<synchronous>, transform_indices = @transform_5, window_bounds = array<i64: 64, 32>}, {pipeline_mode = #tpu.pipeline_mode<synchronous>, transform_indices = @transform_6, window_bounds = array<i64: 1, 32>}, {transform_indices = @transform_7, window_bounds = array<i64: 128, 32>}]} {
    %c0 = arith.constant 0 : index
    %c0_0 = arith.constant 0 : index
    %0 = vector.load %arg1[%c0, %c0_0] : memref<128x32xf32, #tpu.memory_space<vmem>>, vector<128x32xf32>
    %c0_1 = arith.constant 0 : index
    %c0_2 = arith.constant 0 : index
    %1 = vector.load %arg2[%c0_1, %c0_2] : memref<128x16xf32, #tpu.memory_space<vmem>>, vector<128x16xf32>
    %c0_3 = arith.constant 0 : index
    %c0_4 = arith.constant 0 : index
    %2 = vector.load %arg3[%c0_3, %c0_4] : memref<32x64xf32, #tpu.memory_space<vmem>>, vector<32x64xf32>
    %cst = arith.constant dense<0.000000e+00> : vector<128x64xf32>
    %3 = tpu.matmul %0, %2, %cst {dimension_numbers = #tpu.dot_dimension_numbers<[1], [0], [0], [1], [0, 0, 1, 1], [], []>} : vector<128x32xf32>, vector<32x64xf32>, vector<128x64xf32> -> vector<128x64xf32>
    %c0_5 = arith.constant 0 : index
    %c0_6 = arith.constant 0 : index
    %4 = vector.load %arg4[%c0_5, %c0_6] : memref<16x64xf32, #tpu.memory_space<vmem>>, vector<16x64xf32>
    %cst_7 = arith.constant dense<0.000000e+00> : vector<128x64xf32>
    %5 = tpu.matmul %1, %4, %cst_7 {dimension_numbers = #tpu.dot_dimension_numbers<[1], [0], [0], [1], [0, 0, 1, 1], [], []>} : vector<128x16xf32>, vector<16x64xf32>, vector<128x64xf32> -> vector<128x64xf32>
    %6 = arith.addf %3, %5 : vector<128x64xf32>
    %c0_8 = arith.constant 0 : index
    %c0_9 = arith.constant 0 : index
    %7 = vector.load %arg5[%c0_8, %c0_9] : memref<1x64xf32, #tpu.memory_space<vmem>>, vector<1x64xf32>
    %8 = vector.broadcast %7 : vector<1x64xf32> to vector<128x64xf32>
    %9 = arith.addf %6, %8 : vector<128x64xf32>
    %cst_10 = arith.constant 0.000000e+00 : f32
    %10 = vector.broadcast %cst_10 : f32 to vector<128x64xf32>
    %11 = arith.maximumf %9, %10 : vector<128x64xf32>
    %c0_11 = arith.constant 0 : index
    %c0_12 = arith.constant 0 : index
    %12 = vector.load %arg6[%c0_11, %c0_12] : memref<64x32xf32, #tpu.memory_space<vmem>>, vector<64x32xf32>
    %cst_13 = arith.constant dense<0.000000e+00> : vector<128x32xf32>
    %13 = tpu.matmul %11, %12, %cst_13 {dimension_numbers = #tpu.dot_dimension_numbers<[1], [0], [0], [1], [0, 0, 1, 1], [], []>} : vector<128x64xf32>, vector<64x32xf32>, vector<128x32xf32> -> vector<128x32xf32>
    %c0_14 = arith.constant 0 : index
    %c0_15 = arith.constant 0 : index
    %14 = vector.load %arg7[%c0_14, %c0_15] : memref<1x32xf32, #tpu.memory_space<vmem>>, vector<1x32xf32>
    %15 = vector.broadcast %14 : vector<1x32xf32> to vector<128x32xf32>
    %16 = arith.addf %13, %15 : vector<128x32xf32>
    %17 = arith.addf %0, %16 : vector<128x32xf32>
    %c0_16 = arith.constant 0 : index
    %c0_17 = arith.constant 0 : index
    %18 = vector.load %arg8[%c0_16, %c0_17] : memref<128x32xf32, #tpu.memory_space<vmem>>, vector<128x32xf32>
    tpu.vector_store %arg8[%c0_16, %c0_17], %17 {strides = array<i32>} : memref<128x32xf32, #tpu.memory_space<vmem>>, vector<128x32xf32>,
    return
  }
  func.func @transform_0(%arg0: i32) -> (i32, i32) {
    %c0_i32 = arith.constant 0 : i32
    %c0_i32_0 = arith.constant 0 : i32
    return %arg0, %c0_i32 : i32, i32
  }
  func.func @transform_1(%arg0: i32) -> (i32, i32) {
    %c0_i32 = arith.constant 0 : i32
    %c0_i32_0 = arith.constant 0 : i32
    return %arg0, %c0_i32 : i32, i32
  }
  func.func @transform_2(%arg0: i32) -> (i32, i32) {
    %c0_i32 = arith.constant 0 : i32
    %c0_i32_0 = arith.constant 0 : i32
    %c0_i32_1 = arith.constant 0 : i32
    return %c0_i32, %c0_i32_0 : i32, i32
  }
  func.func @transform_3(%arg0: i32) -> (i32, i32) {
    %c0_i32 = arith.constant 0 : i32
    %c0_i32_0 = arith.constant 0 : i32
    %c0_i32_1 = arith.constant 0 : i32
    return %c0_i32, %c0_i32_0 : i32, i32
  }
  func.func @transform_4(%arg0: i32) -> (i32, i32) {
    %c0_i32 = arith.constant 0 : i32
    %c0_i32_0 = arith.constant 0 : i32
    %c0_i32_1 = arith.constant 0 : i32
    return %c0_i32, %c0_i32_0 : i32, i32
  }
  func.func @transform_5(%arg0: i32) -> (i32, i32) {
    %c0_i32 = arith.constant 0 : i32
    %c0_i32_0 = arith.constant 0 : i32
    %c0_i32_1 = arith.constant 0 : i32
    return %c0_i32, %c0_i32_0 : i32, i32
  }
  func.func @transform_6(%arg0: i32) -> (i32, i32) {
    %c0_i32 = arith.constant 0 : i32
    %c0_i32_0 = arith.constant 0 : i32
    %c0_i32_1 = arith.constant 0 : i32
    return %c0_i32, %c0_i32_0 : i32, i32
  }
  func.func @transform_7(%arg0: i32) -> (i32, i32) {
    %c0_i32 = arith.constant 0 : i32
    %c0_i32_0 = arith.constant 0 : i32
    return %arg0, %c0_i32 : i32, i32
  }
}

</mosaic_0001>

<llo_original>
// kernel: tpu_custom_call.1
$region0: #{tpu_custom_call.1}
  #allocation0 [shape = 'u32[]', space=smem, size = 0x4, offset = 0x4, fixed_abs, tag = 'smem constant byte address 0x4 - core index']
  #allocation1 [shape = 'u32[144,128]{1,0:T(1,128)}', space=vmem, size = 0x12000, scoped, tag = 'internal scratch']
  %s0 = inlined_call_operand.vmem [shape: f32[256,32], index: 0, kind: input, shape index: {}]
  %s1 = inlined_call_operand.vmem [shape: f32[256,16], index: 1, kind: input, shape index: {}]
  %s2 = inlined_call_operand.vmem [shape: f32[32,64], index: 2, kind: input, shape index: {}]
  %s3 = inlined_call_operand.vmem [shape: f32[16,64], index: 3, kind: input, shape index: {}]
  %s4 = inlined_call_operand.vmem [shape: f32[1,64], index: 4, kind: input, shape index: {}]
  %s5 = inlined_call_operand.vmem [shape: f32[64,32], index: 5, kind: input, shape index: {}]
  %s6 = inlined_call_operand.vmem [shape: f32[1,32], index: 6, kind: input, shape index: {}]
  %s7 = inlined_call_operand.vmem [shape: f32[256,32], index: 7, kind: output, shape index: {}]
  %s8 = sld [smem:[#allocation0]]
  $region61: #{tpu_custom_call.1} parent=0
    _
  %s10 = ssub.s32 1, %s8
  %s11 = scalar_select 0, %s10, %s8
  loop: start=0, step=1, limit=4
  $region2: #{tpu_custom_call.1} parent=0 // loop_pre_header
    _
  $region3: #{tpu_custom_call.1} parent=0 // loop_header
    %s13 = sphi 0, %s17
    %p14 = scmp.ge.s32.totalorder %s13, 4
    %s23 = sphi 0, %s25
    %s26 = sphi 0, %s23
    %s27 = sphi 0, %s26
    %s43 = sphi 0, %s27
    %s49 = sphi 0, %s51
    %s52 = sphi 0, %s49
    %s53 = sphi 0, %s52
    %s69 = sphi 0, %s53
    %s73 = sphi 0, %s73
    %s75 = sphi 0, %s73
    %s76 = sphi 0, %s75
    %s90 = sphi 0, %s76
    %s94 = sphi 0, %s94
    %s96 = sphi 0, %s94
    %s97 = sphi 0, %s96
    %s111 = sphi 0, %s97
    %s115 = sphi 0, %s115
    %s117 = sphi 0, %s115
    %s118 = sphi 0, %s117
    %s132 = sphi 0, %s118
    %s136 = sphi 0, %s136
    %s138 = sphi 0, %s136
    %s139 = sphi 0, %s138
    %s153 = sphi 0, %s139
    %s157 = sphi 0, %s157
    %s159 = sphi 0, %s157
    %s160 = sphi 0, %s159
    %s174 = sphi 0, %s160
    %s180 = sphi 0, %s182
    %s183 = sphi 0, %s180
    %s184 = sphi 0, %s183
    %s200 = sphi 0, %s184
  $region4: #{tpu_custom_call.1} parent=0 // loop_header_branch
    %16 = sbr.rel (%p14) target = $region8
  $region5: #{tpu_custom_call.1} parent=0 // loop_body
    %s18 = ssub.s32 %s13, 1
    %s19 = ssub.s32 %s13, 2
    %s20 = sadd.s32 %s13, 1
    %s21 = ssub.s32 %s13, %s20
    %p22 = scmp.eq.s32.totalorder %s21, 0
    %s24 = sadd.s32 %s23, 1
    %s25 = scalar_select %p22, %s23, %s24
    %p28 = pneg %p22
    %p29 = scmp.eq.s32.totalorder %s13, 1
    %p30 = por %p28, %p29
    %p31 = scmp.ne.s32.totalorder %s23, %s26
    %p32 = scmp.eq.s32.totalorder %s13, 0
    %p33 = por %p31, %p32
    %p34 = scmp.ne.s32.totalorder %s23, %s26
    %p35 = scmp.eq.s32.totalorder %s18, 1
    %p36 = por %p34, %p35
    %p37 = scmp.ne.s32.totalorder %s26, %s27
    %p38 = scmp.eq.s32.totalorder %s18, 0
    %p39 = por %p37, %p38
    %p40 = scmp.ne.s32.totalorder %s26, %s27
    %p41 = scmp.eq.s32.totalorder %s19, 1
    %p42 = por %p40, %p41
    %p44 = scmp.ne.s32.totalorder %s27, %s43
    %p45 = scmp.eq.s32.totalorder %s19, 0
    %p46 = por %p44, %p45
    %s47 = ssub.s32 %s13, %s20
    %p48 = scmp.eq.s32.totalorder %s47, 0
    %s50 = sadd.s32 %s49, 1
    %s51 = scalar_select %p48, %s49, %s50
    %p54 = pneg %p48
    %p55 = scmp.eq.s32.totalorder %s13, 1
    %p56 = por %p54, %p55
    %p57 = scmp.ne.s32.totalorder %s49, %s52
    %p58 = scmp.eq.s32.totalorder %s13, 0
    %p59 = por %p57, %p58
    %p60 = scmp.ne.s32.totalorder %s49, %s52
    %p61 = scmp.eq.s32.totalorder %s18, 1
    %p62 = por %p60, %p61
    %p63 = scmp.ne.s32.totalorder %s52, %s53
    %p64 = scmp.eq.s32.totalorder %s18, 0
    %p65 = por %p63, %p64
    %p66 = scmp.ne.s32.totalorder %s52, %s53
    %p67 = scmp.eq.s32.totalorder %s19, 1
    %p68 = por %p66, %p67
    %p70 = scmp.ne.s32.totalorder %s53, %s69
    %p71 = scmp.eq.s32.totalorder %s19, 0
    %p72 = por %p70, %p71
    %s74 = sadd.s32 %s73, 1
    %p77 = scmp.eq.s32.totalorder %s13, 1
    %p78 = scmp.ne.s32.totalorder %s73, %s75
    %p79 = scmp.eq.s32.totalorder %s13, 0
    %p80 = por %p78, %p79
    %p81 = scmp.ne.s32.totalorder %s73, %s75
    %p82 = scmp.eq.s32.totalorder %s18, 1
    %p83 = por %p81, %p82
    %p84 = scmp.ne.s32.totalorder %s75, %s76
    %p85 = scmp.eq.s32.totalorder %s18, 0
    %p86 = por %p84, %p85
    %p87 = scmp.ne.s32.totalorder %s75, %s76
    %p88 = scmp.eq.s32.totalorder %s19, 1
    %p89 = por %p87, %p88
    %p91 = scmp.ne.s32.totalorder %s76, %s90
    %p92 = scmp.eq.s32.totalorder %s19, 0
    %p93 = por %p91, %p92
    %s95 = sadd.s32 %s94, 1
    %p98 = scmp.eq.s32.totalorder %s13, 1
    %p99 = scmp.ne.s32.totalorder %s94, %s96
    %p100 = scmp.eq.s32.totalorder %s13, 0
    %p101 = por %p99, %p100
    %p102 = scmp.ne.s32.totalorder %s94, %s96
    %p103 = scmp.eq.s32.totalorder %s18, 1
    %p104 = por %p102, %p103
    %p105 = scmp.ne.s32.totalorder %s96, %s97
    %p106 = scmp.eq.s32.totalorder %s18, 0
    %p107 = por %p105, %p106
    %p108 = scmp.ne.s32.totalorder %s96, %s97
    %p109 = scmp.eq.s32.totalorder %s19, 1
    %p110 = por %p108, %p109
    %p112 = scmp.ne.s32.totalorder %s97, %s111
    %p113 = scmp.eq.s32.totalorder %s19, 0
    %p114 = por %p112, %p113
    %s116 = sadd.s32 %s115, 1
    %p119 = scmp.eq.s32.totalorder %s13, 1
    %p120 = scmp.ne.s32.totalorder %s115, %s117
    %p121 = scmp.eq.s32.totalorder %s13, 0
    %p122 = por %p120, %p121
    %p123 = scmp.ne.s32.totalorder %s115, %s117
    %p124 = scmp.eq.s32.totalorder %s18, 1
    %p125 = por %p123, %p124
    %p126 = scmp.ne.s32.totalorder %s117, %s118
    %p127 = scmp.eq.s32.totalorder %s18, 0
    %p128 = por %p126, %p127
    %p129 = scmp.ne.s32.totalorder %s117, %s118
    %p130 = scmp.eq.s32.totalorder %s19, 1
    %p131 = por %p129, %p130
    %p133 = scmp.ne.s32.totalorder %s118, %s132
    %p134 = scmp.eq.s32.totalorder %s19, 0
    %p135 = por %p133, %p134
    %s137 = sadd.s32 %s136, 1
    %p140 = scmp.eq.s32.totalorder %s13, 1
    %p141 = scmp.ne.s32.totalorder %s136, %s138
    %p142 = scmp.eq.s32.totalorder %s13, 0
    %p143 = por %p141, %p142
    %p144 = scmp.ne.s32.totalorder %s136, %s138
    %p145 = scmp.eq.s32.totalorder %s18, 1
    %p146 = por %p144, %p145
    %p147 = scmp.ne.s32.totalorder %s138, %s139
    %p148 = scmp.eq.s32.totalorder %s18, 0
    %p149 = por %p147, %p148
    %p150 = scmp.ne.s32.totalorder %s138, %s139
    %p151 = scmp.eq.s32.totalorder %s19, 1
    %p152 = por %p150, %p151
    %p154 = scmp.ne.s32.totalorder %s139, %s153
    %p155 = scmp.eq.s32.totalorder %s19, 0
    %p156 = por %p154, %p155
    %s158 = sadd.s32 %s157, 1
    %p161 = scmp.eq.s32.totalorder %s13, 1
    %p162 = scmp.ne.s32.totalorder %s157, %s159
    %p163 = scmp.eq.s32.totalorder %s13, 0
    %p164 = por %p162, %p163
    %p165 = scmp.ne.s32.totalorder %s157, %s159
    %p166 = scmp.eq.s32.totalorder %s18, 1
    %p167 = por %p165, %p166
    %p168 = scmp.ne.s32.totalorder %s159, %s160
    %p169 = scmp.eq.s32.totalorder %s18, 0
    %p170 = por %p168, %p169
    %p171 = scmp.ne.s32.totalorder %s159, %s160
    %p172 = scmp.eq.s32.totalorder %s19, 1
    %p173 = por %p171, %p172
    %p175 = scmp.ne.s32.totalorder %s160, %s174
    %p176 = scmp.eq.s32.totalorder %s19, 0
    %p177 = por %p175, %p176
    %s178 = ssub.s32 %s13, %s20
    %p179 = scmp.eq.s32.totalorder %s178, 0
    %s181 = sadd.s32 %s180, 1
    %s182 = scalar_select %p179, %s180, %s181
    %p185 = pneg %p179
    %p186 = scmp.eq.s32.totalorder %s13, 1
    %p187 = por %p185, %p186
    %p188 = scmp.ne.s32.totalorder %s180, %s183
    %p189 = scmp.eq.s32.totalorder %s13, 0
    %p190 = por %p188, %p189
    %p191 = scmp.ne.s32.totalorder %s180, %s183
    %p192 = scmp.eq.s32.totalorder %s18, 1
    %p193 = por %p191, %p192
    %p194 = scmp.ne.s32.totalorder %s183, %s184
    %p195 = scmp.eq.s32.totalorder %s18, 0
    %p196 = por %p194, %p195
    %p197 = scmp.ne.s32.totalorder %s183, %s184
    %p198 = scmp.eq.s32.totalorder %s19, 1
    %p199 = por %p197, %p198
    %p201 = scmp.ne.s32.totalorder %s184, %s200
    %p202 = scmp.eq.s32.totalorder %s19, 0
    %p203 = por %p201, %p202
    %p204 = scmp.le.s32.totalorder 1, %s13
    %p205 = scmp.lt.s32.totalorder %s13, 3
    %p206 = pnand %p204, %p205
    %p207 = pneg %p206
    // Predicated region
    $region9: #{tpu_custom_call.1} parent=5 // pred_check
      _
    $region10: #{tpu_custom_call.1} parent=5 // pred_check_branch
      %209 = sbr.rel (%p206) target = $region12
    $region11: #{tpu_custom_call.1} parent=5 // pred_region
      %s210 = ssub.s32 %s13, 1
      // Predicated region
      $region13: #{tpu_custom_call.1} parent=11 // pred_check
        %p211 = pneg %p86
      $region14: #{tpu_custom_call.1} parent=11 // pred_check_branch
        %213 = sbr.rel (%p211) target = $region16
      $region15: #{tpu_custom_call.1} parent=11 // pred_region
        _
      $region16: #{tpu_custom_call.1} parent=11 // pred_fallthru
        _
      // Predicated region
      $region17: #{tpu_custom_call.1} parent=11 // pred_check
        %p214 = pneg %p107
      $region18: #{tpu_custom_call.1} parent=11 // pred_check_branch
        %216 = sbr.rel (%p214) target = $region20
      $region19: #{tpu_custom_call.1} parent=11 // pred_region
        _
      $region20: #{tpu_custom_call.1} parent=11 // pred_fallthru
        _
      // Predicated region
      $region21: #{tpu_custom_call.1} parent=11 // pred_check
        %p217 = pneg %p128
      $region22: #{tpu_custom_call.1} parent=11 // pred_check_branch
        %219 = sbr.rel (%p217) target = $region24
      $region23: #{tpu_custom_call.1} parent=11 // pred_region
        _
      $region24: #{tpu_custom_call.1} parent=11 // pred_fallthru
        _
      // Predicated region
      $region25: #{tpu_custom_call.1} parent=11 // pred_check
        %p220 = pneg %p149
      $region26: #{tpu_custom_call.1} parent=11 // pred_check_branch
        %222 = sbr.rel (%p220) target = $region28
      $region27: #{tpu_custom_call.1} parent=11 // pred_region
        _
      $region28: #{tpu_custom_call.1} parent=11 // pred_fallthru
        _
      // Predicated region
      $region29: #{tpu_custom_call.1} parent=11 // pred_check
        %p223 = pneg %p170
      $region30: #{tpu_custom_call.1} parent=11 // pred_check_branch
        %225 = sbr.rel (%p223) target = $region32
      $region31: #{tpu_custom_call.1} parent=11 // pred_region
        _
      $region32: #{tpu_custom_call.1} parent=11 // pred_fallthru
        _
    $region12: #{tpu_custom_call.1} parent=5 // pred_fallthru
      _
    %p226 = scmp.lt.s32.totalorder %s13, 2
    // Predicated region
    $region33: #{tpu_custom_call.1} parent=5 // pred_check
      %p227 = pneg %p226
    $region34: #{tpu_custom_call.1} parent=5 // pred_check_branch
      %229 = sbr.rel (%p227) target = $region36
    $region35: #{tpu_custom_call.1} parent=5 // pred_region
      // Predicated region
      $region37: #{tpu_custom_call.1} parent=35 // pred_check
        %p230 = pneg %p33
      $region38: #{tpu_custom_call.1} parent=35 // pred_check_branch
        %232 = sbr.rel (%p230) target = $region40
      $region39: #{tpu_custom_call.1} parent=35 // pred_region
        %s233 = smul.u32 16, %s13
        %p234 = scmp.lt.s32.totalorder %s233, 31
        %s235 = scalar_select %p234, %s233, 31
        %s236 = smul.addr %s235, 8
        %s237 = scalar_lea.vmem %s0, %s236
        %s238 = smul.u32 16, %s13
      $region40: #{tpu_custom_call.1} parent=35 // pred_fallthru
        _
      // Predicated region
      $region41: #{tpu_custom_call.1} parent=35 // pred_check
        %p239 = pneg %p59
      $region42: #{tpu_custom_call.1} parent=35 // pred_check_branch
        %241 = sbr.rel (%p239) target = $region44
      $region43: #{tpu_custom_call.1} parent=35 // pred_region
        %s242 = smul.u32 16, %s13
        %p243 = scmp.lt.s32.totalorder %s242, 31
        %s244 = scalar_select %p243, %s242, 31
        %s245 = smul.addr %s244, 8
        %s246 = scalar_lea.vmem %s1, %s245
        %s247 = smul.u32 16, %s13
      $region44: #{tpu_custom_call.1} parent=35 // pred_fallthru
        _
    $region36: #{tpu_custom_call.1} parent=5 // pred_fallthru
      _
    %p248 = scmp.le.s32.totalorder 1, %s13
    %p249 = scmp.lt.s32.totalorder %s13, 3
    %p250 = pnand %p248, %p249
    %p251 = pneg %p250
    // Predicated region
    $region45: #{tpu_custom_call.1} parent=5 // pred_check
      _
    $region46: #{tpu_custom_call.1} parent=5 // pred_check_branch
      %253 = sbr.rel (%p250) target = $region48
    $region47: #{tpu_custom_call.1} parent=5 // pred_region
      %s254 = ssub.s32 %s13, 1
      %s255 = smul.u32 16, %s18
      %p256 = scmp.lt.s32.totalorder %s255, 31
      %s257 = scalar_select %p256, %s255, 31
      %s258 = smul.addr %s257, 8
      %s259 = scalar_lea.vmem %s0, %s258
      %p260 = pneg %p39
      %p261 = pneg %p36
      %s262 = smul.u32 16, %s18
      %p263 = scmp.lt.s32.totalorder %s262, 31
      %s264 = scalar_select %p263, %s262, 31
      %s265 = smul.addr %s264, 8
      %s266 = scalar_lea.vmem %s1, %s265
      %p267 = pneg %p65
      %p268 = pneg %p62
      %p269 = pneg %p86
      %p270 = pneg %p83
      %p271 = pneg %p107
      %p272 = pneg %p104
      %p273 = pneg %p128
      %p274 = pneg %p125
      %p275 = pneg %p149
      %p276 = pneg %p146
      %p277 = pneg %p170
      %p278 = pneg %p167
      %p279 = pneg %p196
      %p280 = pneg %p193
      %s281 = smul.u32 16, %s18
      %p282 = scmp.lt.s32.totalorder %s281, 31
      %s283 = scalar_select %p282, %s281, 31
      %s284 = smul.addr %s283, 8
      %s285 = scalar_lea.vmem %s7, %s284
      %s286 = smul.u32 16, %s18
      %p287 = scmp.lt.s32.totalorder %s286, 31
      %s288 = scalar_select %p287, %s286, 31
      %s289 = smul.addr %s288, 8
      %s290 = scalar_lea.vmem %s0, %s289
      %s291 = smul.u32 16, %s18
      %s292 = smul.u32 16, %s18
      %p293 = scmp.lt.s32.totalorder %s292, 31
      %s294 = scalar_select %p293, %s292, 31
      %s295 = smul.addr %s294, 8
      %s296 = scalar_lea.vmem %s1, %s295
      %s297 = smul.u32 16, %s18
      %s298 = smul.u32 16, %s18
      %p299 = scmp.lt.s32.totalorder %s298, 31
      %s300 = scalar_select %p299, %s298, 31
      %s301 = smul.addr %s300, 8
      %s302 = scalar_lea.vmem %s7, %s301
      %s303 = smul.u32 16, %s18
      %v304 = vld [vmem:[%s290] sm:$0xff]
      %v305 = vld [vmem:[%s290 + $0x8] sm:$0xff]
      %v306 = vld [vmem:[%s290 + $0x10] sm:$0xff]
      %v307 = vld [vmem:[%s290 + $0x18] sm:$0xff]
      %v308 = vld [vmem:[%s290 + $0x20] sm:$0xff]
      %v309 = vld [vmem:[%s290 + $0x28] sm:$0xff]
      %v310 = vld [vmem:[%s290 + $0x30] sm:$0xff]
      %v311 = vld [vmem:[%s290 + $0x38] sm:$0xff]
      %v312 = vld [vmem:[%s290 + $0x40] sm:$0xff]
      %v313 = vld [vmem:[%s290 + $0x48] sm:$0xff]
      %v314 = vld [vmem:[%s290 + $0x50] sm:$0xff]
      %v315 = vld [vmem:[%s290 + $0x58] sm:$0xff]
      %v316 = vld [vmem:[%s290 + $0x60] sm:$0xff]
      %v317 = vld [vmem:[%s290 + $0x68] sm:$0xff]
      %v318 = vld [vmem:[%s290 + $0x70] sm:$0xff]
      %v319 = vld [vmem:[%s290 + $0x78] sm:$0xff]
      %v320 = vld [vmem:[%s296] sm:$0xff]
      %v321 = vld [vmem:[%s296 + $0x8] sm:$0xff]
      %v322 = vld [vmem:[%s296 + $0x10] sm:$0xff]
      %v323 = vld [vmem:[%s296 + $0x18] sm:$0xff]
      %v324 = vld [vmem:[%s296 + $0x20] sm:$0xff]
      %v325 = vld [vmem:[%s296 + $0x28] sm:$0xff]
      %v326 = vld [vmem:[%s296 + $0x30] sm:$0xff]
      %v327 = vld [vmem:[%s296 + $0x38] sm:$0xff]
      %v328 = vld [vmem:[%s296 + $0x40] sm:$0xff]
      %v329 = vld [vmem:[%s296 + $0x48] sm:$0xff]
      %v330 = vld [vmem:[%s296 + $0x50] sm:$0xff]
      %v331 = vld [vmem:[%s296 + $0x58] sm:$0xff]
      %v332 = vld [vmem:[%s296 + $0x60] sm:$0xff]
      %v333 = vld [vmem:[%s296 + $0x68] sm:$0xff]
      %v334 = vld [vmem:[%s296 + $0x70] sm:$0xff]
      %v335 = vld [vmem:[%s296 + $0x78] sm:$0xff]
      %v336 = vld [vmem:[%s2] sm:$0xff]
      %v337 = vld [vmem:[%s2 + $0x8] sm:$0xff]
      %v338 = vld [vmem:[%s2 + $0x10] sm:$0xff]
      %v339 = vld [vmem:[%s2 + $0x18] sm:$0xff]
      %v340 = vld [vmem:[%s3] sm:$0xff]
      %v341 = vld [vmem:[%s3 + $0x8] sm:$0xff]
      %vm342 = vcmask 130048
      %v344 = vsel %vm342, %v320, 0
      %v347 = vsel %vm342, %v321, 0
      %v350 = vsel %vm342, %v322, 0
      %v353 = vsel %vm342, %v323, 0
      %v356 = vsel %vm342, %v324, 0
      %v359 = vsel %vm342, %v325, 0
      %v362 = vsel %vm342, %v326, 0
      %v365 = vsel %vm342, %v327, 0
      %v368 = vsel %vm342, %v328, 0
      %v371 = vsel %vm342, %v329, 0
      %v374 = vsel %vm342, %v330, 0
      %v377 = vsel %vm342, %v331, 0
      %v380 = vsel %vm342, %v332, 0
      %v383 = vsel %vm342, %v333, 0
      %v386 = vsel %vm342, %v334, 0
      %v389 = vsel %vm342, %v335, 0
      %391 = vmatprep.subr.mxu0 0.0
      %392 = vmatpush1.msra.mxu0 0.0
      %393 = vmatprep.subr.mxu0 0.0
      %394 = vmatpush1.msra.mxu0 0.0
      %395 = vmatprep.subr.mxu0 0.0
      %396 = vmatpush1.msra.mxu0 0.0
      %397 = vmatprep.subr.mxu0 0.0
      %398 = vmatpush1.msra.mxu0 0.0
      %399 = vmatprep.subr.mxu0 0.0
      %400 = vmatpush1.msra.mxu0 0.0
      %401 = vmatprep.subr.mxu0 0.0
      %402 = vmatpush1.msra.mxu0 0.0
      %403 = vmatprep.subr.mxu0 0.0
      %404 = vmatpush1.msra.mxu0 0.0
      %405 = vmatprep.subr.mxu0 0.0
      %406 = vmatpush1.msra.mxu0 0.0
      %407 = vmatprep.subr.mxu0 0.0
      %408 = vmatpush1.msra.mxu0 0.0
      %409 = vmatprep.subr.mxu0 0.0
      %410 = vmatpush1.msra.mxu0 0.0
      %411 = vmatprep.subr.mxu0 0.0
      %412 = vmatpush1.msra.mxu0 0.0
      %413 = vmatprep.subr.mxu0 0.0
      %414 = vmatpush1.msra.mxu0 0.0
      %415 = vmatprep.subr.mxu0 0.0
      %416 = vmatpush1.msra.mxu0 0.0
      %417 = vmatprep.subr.mxu0 0.0
      %418 = vmatpush1.msra.mxu0 0.0
      %419 = vmatprep.subr.mxu0 0.0
      %420 = vmatpush1.msra.mxu0 %v341
      %421 = vmatprep.subr.mxu0 0.0
      %422 = vmatpush1.msra.mxu0 %v340
      %423 = vmatprep.subr.mxu0 0.0
      %424 = vmatpush2.msra.mxu0 0.0
      %425 = vmatprep.subr.mxu0 0.0
      %426 = vmatpush2.msra.mxu0 0.0
      %427 = vmatprep.subr.mxu0 0.0
      %428 = vmatpush2.msra.mxu0 0.0
      %429 = vmatprep.subr.mxu0 0.0
      %430 = vmatpush2.msra.mxu0 0.0
      %431 = vmatprep.subr.mxu0 0.0
      %432 = vmatpush2.msra.mxu0 0.0
      %433 = vmatprep.subr.mxu0 0.0
      %434 = vmatpush2.msra.mxu0 0.0
      %435 = vmatprep.subr.mxu0 0.0
      %436 = vmatpush2.msra.mxu0 0.0
      %437 = vmatprep.subr.mxu0 0.0
      %438 = vmatpush2.msra.mxu0 0.0
      %439 = vmatprep.subr.mxu0 0.0
      %440 = vmatpush2.msra.mxu0 0.0
      %441 = vmatprep.subr.mxu0 0.0
      %442 = vmatpush2.msra.mxu0 0.0
      %443 = vmatprep.subr.mxu0 0.0
      %444 = vmatpush2.msra.mxu0 0.0
      %445 = vmatprep.subr.mxu0 0.0
      %446 = vmatpush2.msra.mxu0 0.0
      %447 = vmatprep.subr.mxu0 0.0
      %448 = vmatpush2.msra.mxu0 0.0
      %449 = vmatprep.subr.mxu0 0.0
      %450 = vmatpush2.msra.mxu0 0.0
      %451 = vmatprep.subr.mxu0 0.0
      %452 = vmatpush2.msra.mxu0 0.0
      %453 = vmatprep.subr.mxu0 0.0
      %454 = vmatpush2.msra.mxu0 0.0
      %455 = vmatprep.mubr.f32.mxu0 0.0
      %456 = vmatmul.mubr.f32.gmra.mxu0 %v344
      %v457 = vpop.f32.mrf.mxu0
      %v458 = vadd.f32 0.0, %v457
      %v459 = vpop.f32.mrf.mxu0
      %460 = vmatprep.mubr.f32.mxu0 0.0
      %461 = vmatmul.mubr.f32.gmra.mxu0 %v347
      %v462 = vpop.f32.mrf.mxu0
      %v463 = vadd.f32 0.0, %v462
      %v464 = vpop.f32.mrf.mxu0
      %465 = vmatprep.mubr.f32.mxu0 0.0
      %466 = vmatmul.mubr.f32.gmra.mxu0 %v350
      %v467 = vpop.f32.mrf.mxu0
      %v468 = vadd.f32 0.0, %v467
      %v469 = vpop.f32.mrf.mxu0
      %470 = vmatprep.mubr.f32.mxu0 0.0
      %471 = vmatmul.mubr.f32.gmra.mxu0 %v353
      %v472 = vpop.f32.mrf.mxu0
      %v473 = vadd.f32 0.0, %v472
      %v474 = vpop.f32.mrf.mxu0
      %475 = vmatprep.mubr.f32.mxu0 0.0
      %476 = vmatmul.mubr.f32.gmra.mxu0 %v356
      %v477 = vpop.f32.mrf.mxu0
      %v478 = vadd.f32 0.0, %v477
      %v479 = vpop.f32.mrf.mxu0
      %480 = vmatprep.mubr.f32.mxu0 0.0
      %481 = vmatmul.mubr.f32.gmra.mxu0 %v359
      %v482 = vpop.f32.mrf.mxu0
      %v483 = vadd.f32 0.0, %v482
      %v484 = vpop.f32.mrf.mxu0
      %485 = vmatprep.mubr.f32.mxu0 0.0
      %486 = vmatmul.mubr.f32.gmra.mxu0 %v362
      %v487 = vpop.f32.mrf.mxu0
      %v488 = vadd.f32 0.0, %v487
      %v489 = vpop.f32.mrf.mxu0
      %490 = vmatprep.mubr.f32.mxu0 0.0
      %491 = vmatmul.mubr.f32.gmra.mxu0 %v365
      %v492 = vpop.f32.mrf.mxu0
      %v493 = vadd.f32 0.0, %v492
      %v494 = vpop.f32.mrf.mxu0
      %495 = vmatprep.mubr.f32.mxu0 0.0
      %496 = vmatmul.mubr.f32.gmra.mxu0 %v368
      %v497 = vpop.f32.mrf.mxu0
      %v498 = vadd.f32 0.0, %v497
      %v499 = vpop.f32.mrf.mxu0
      %500 = vmatprep.mubr.f32.mxu0 0.0
      %501 = vmatmul.mubr.f32.gmra.mxu0 %v371
      %v502 = vpop.f32.mrf.mxu0
      %v503 = vadd.f32 0.0, %v502
      %v504 = vpop.f32.mrf.mxu0
      %505 = vmatprep.mubr.f32.mxu0 0.0
      %506 = vmatmul.mubr.f32.gmra.mxu0 %v374
      %v507 = vpop.f32.mrf.mxu0
      %v508 = vadd.f32 0.0, %v507
      %v509 = vpop.f32.mrf.mxu0
      %510 = vmatprep.mubr.f32.mxu0 0.0
      %511 = vmatmul.mubr.f32.gmra.mxu0 %v377
      %v512 = vpop.f32.mrf.mxu0
      %v513 = vadd.f32 0.0, %v512
      %v514 = vpop.f32.mrf.mxu0
      %515 = vmatprep.mubr.f32.mxu0 0.0
      %516 = vmatmul.mubr.f32.gmra.mxu0 %v380
      %v517 = vpop.f32.mrf.mxu0
      %v518 = vadd.f32 0.0, %v517
      %v519 = vpop.f32.mrf.mxu0
      %520 = vmatprep.mubr.f32.mxu0 0.0
      %521 = vmatmul.mubr.f32.gmra.mxu0 %v383
      %v522 = vpop.f32.mrf.mxu0
      %v523 = vadd.f32 0.0, %v522
      %v524 = vpop.f32.mrf.mxu0
      %525 = vmatprep.mubr.f32.mxu0 0.0
      %526 = vmatmul.mubr.f32.gmra.mxu0 %v386
      %v527 = vpop.f32.mrf.mxu0
      %v528 = vadd.f32 0.0, %v527
      %v529 = vpop.f32.mrf.mxu0
      %530 = vmatprep.mubr.f32.mxu0 0.0
      %531 = vmatmul.mubr.f32.gmra.mxu0 %v389
      %v532 = vpop.f32.mrf.mxu0
      %v533 = vadd.f32 0.0, %v532
      %v534 = vpop.f32.mrf.mxu0
      %535 = vdwg.mxu0
      %vm536 = vcmask 261120
      %v538 = vsel %vm536, %v304, 0
      %v541 = vsel %vm536, %v305, 0
      %v544 = vsel %vm536, %v306, 0
      %v547 = vsel %vm536, %v307, 0
      %v550 = vsel %vm536, %v308, 0
      %v553 = vsel %vm536, %v309, 0
      %v556 = vsel %vm536, %v310, 0
      %v559 = vsel %vm536, %v311, 0
      %v562 = vsel %vm536, %v312, 0
      %v565 = vsel %vm536, %v313, 0
      %v568 = vsel %vm536, %v314, 0
      %v571 = vsel %vm536, %v315, 0
      %v574 = vsel %vm536, %v316, 0
      %v577 = vsel %vm536, %v317, 0
      %v580 = vsel %vm536, %v318, 0
      %v583 = vsel %vm536, %v319, 0
      %585 = vmatprep.subr.mxu0 0.0
      %586 = vmatpush1.msra.mxu0 0.0
      %587 = vmatprep.subr.mxu0 0.0
      %588 = vmatpush1.msra.mxu0 0.0
      %589 = vmatprep.subr.mxu0 0.0
      %590 = vmatpush1.msra.mxu0 0.0
      %591 = vmatprep.subr.mxu0 0.0
      %592 = vmatpush1.msra.mxu0 0.0
      %593 = vmatprep.subr.mxu0 0.0
      %594 = vmatpush1.msra.mxu0 0.0
      %595 = vmatprep.subr.mxu0 0.0
      %596 = vmatpush1.msra.mxu0 0.0
      %597 = vmatprep.subr.mxu0 0.0
      %598 = vmatpush1.msra.mxu0 0.0
      %599 = vmatprep.subr.mxu0 0.0
      %600 = vmatpush1.msra.mxu0 0.0
      %601 = vmatprep.subr.mxu0 0.0
      %602 = vmatpush1.msra.mxu0 0.0
      %603 = vmatprep.subr.mxu0 0.0
      %604 = vmatpush1.msra.mxu0 0.0
      %605 = vmatprep.subr.mxu0 0.0
      %606 = vmatpush1.msra.mxu0 0.0
      %607 = vmatprep.subr.mxu0 0.0
      %608 = vmatpush1.msra.mxu0 0.0
      %609 = vmatprep.subr.mxu0 0.0
      %610 = vmatpush1.msra.mxu0 %v339
      %611 = vmatprep.subr.mxu0 0.0
      %612 = vmatpush1.msra.mxu0 %v338
      %613 = vmatprep.subr.mxu0 0.0
      %614 = vmatpush1.msra.mxu0 %v337
      %615 = vmatprep.subr.mxu0 0.0
      %616 = vmatpush1.msra.mxu0 %v336
      %617 = vmatprep.subr.mxu0 0.0
      %618 = vmatpush2.msra.mxu0 0.0
      %619 = vmatprep.subr.mxu0 0.0
      %620 = vmatpush2.msra.mxu0 0.0
      %621 = vmatprep.subr.mxu0 0.0
      %622 = vmatpush2.msra.mxu0 0.0
      %623 = vmatprep.subr.mxu0 0.0
      %624 = vmatpush2.msra.mxu0 0.0
      %625 = vmatprep.subr.mxu0 0.0
      %626 = vmatpush2.msra.mxu0 0.0
      %627 = vmatprep.subr.mxu0 0.0
      %628 = vmatpush2.msra.mxu0 0.0
      %629 = vmatprep.subr.mxu0 0.0
      %630 = vmatpush2.msra.mxu0 0.0
      %631 = vmatprep.subr.mxu0 0.0
      %632 = vmatpush2.msra.mxu0 0.0
      %633 = vmatprep.subr.mxu0 0.0
      %634 = vmatpush2.msra.mxu0 0.0
      %635 = vmatprep.subr.mxu0 0.0
      %636 = vmatpush2.msra.mxu0 0.0
      %637 = vmatprep.subr.mxu0 0.0
      %638 = vmatpush2.msra.mxu0 0.0
      %639 = vmatprep.subr.mxu0 0.0
      %640 = vmatpush2.msra.mxu0 0.0
      %641 = vmatprep.subr.mxu0 0.0
      %642 = vmatpush2.msra.mxu0 0.0
      %643 = vmatprep.subr.mxu0 0.0
      %644 = vmatpush2.msra.mxu0 0.0
      %645 = vmatprep.subr.mxu0 0.0
      %646 = vmatpush2.msra.mxu0 0.0
      %647 = vmatprep.subr.mxu0 0.0
      %648 = vmatpush2.msra.mxu0 0.0
      %649 = vmatprep.mubr.f32.mxu0 0.0
      %650 = vmatmul.mubr.f32.gmra.mxu0 %v538
      %v651 = vpop.f32.mrf.mxu0
      %v652 = vadd.f32 %v458, %v651
      %v653 = vpop.f32.mrf.mxu0
      %654 = vmatprep.mubr.f32.mxu0 0.0
      %655 = vmatmul.mubr.f32.gmra.mxu0 %v541
      %v656 = vpop.f32.mrf.mxu0
      %v657 = vadd.f32 %v463, %v656
      %v658 = vpop.f32.mrf.mxu0
      %659 = vmatprep.mubr.f32.mxu0 0.0
      %660 = vmatmul.mubr.f32.gmra.mxu0 %v544
      %v661 = vpop.f32.mrf.mxu0
      %v662 = vadd.f32 %v468, %v661
      %v663 = vpop.f32.mrf.mxu0
      %664 = vmatprep.mubr.f32.mxu0 0.0
      %665 = vmatmul.mubr.f32.gmra.mxu0 %v547
      %v666 = vpop.f32.mrf.mxu0
      %v667 = vadd.f32 %v473, %v666
      %v668 = vpop.f32.mrf.mxu0
      %669 = vmatprep.mubr.f32.mxu0 0.0
      %670 = vmatmul.mubr.f32.gmra.mxu0 %v550
      %v671 = vpop.f32.mrf.mxu0
      %v672 = vadd.f32 %v478, %v671
      %v673 = vpop.f32.mrf.mxu0
      %674 = vmatprep.mubr.f32.mxu0 0.0
      %675 = vmatmul.mubr.f32.gmra.mxu0 %v553
      %v676 = vpop.f32.mrf.mxu0
      %v677 = vadd.f32 %v483, %v676
      %v678 = vpop.f32.mrf.mxu0
      %679 = vmatprep.mubr.f32.mxu0 0.0
      %680 = vmatmul.mubr.f32.gmra.mxu0 %v556
      %v681 = vpop.f32.mrf.mxu0
      %v682 = vadd.f32 %v488, %v681
      %v683 = vpop.f32.mrf.mxu0
      %684 = vmatprep.mubr.f32.mxu0 0.0
      %685 = vmatmul.mubr.f32.gmra.mxu0 %v559
      %v686 = vpop.f32.mrf.mxu0
      %v687 = vadd.f32 %v493, %v686
      %v688 = vpop.f32.mrf.mxu0
      %689 = vmatprep.mubr.f32.mxu0 0.0
      %690 = vmatmul.mubr.f32.gmra.mxu0 %v562
      %v691 = vpop.f32.mrf.mxu0
      %v692 = vadd.f32 %v498, %v691
      %v693 = vpop.f32.mrf.mxu0
      %694 = vmatprep.mubr.f32.mxu0 0.0
      %695 = vmatmul.mubr.f32.gmra.mxu0 %v565
      %v696 = vpop.f32.mrf.mxu0
      %v697 = vadd.f32 %v503, %v696
      %v698 = vpop.f32.mrf.mxu0
      %699 = vmatprep.mubr.f32.mxu0 0.0
      %700 = vmatmul.mubr.f32.gmra.mxu0 %v568
      %v701 = vpop.f32.mrf.mxu0
      %v702 = vadd.f32 %v508, %v701
      %v703 = vpop.f32.mrf.mxu0
      %704 = vmatprep.mubr.f32.mxu0 0.0
      %705 = vmatmul.mubr.f32.gmra.mxu0 %v571
      %v706 = vpop.f32.mrf.mxu0
      %v707 = vadd.f32 %v513, %v706
      %v708 = vpop.f32.mrf.mxu0
      %709 = vmatprep.mubr.f32.mxu0 0.0
      %710 = vmatmul.mubr.f32.gmra.mxu0 %v574
      %v711 = vpop.f32.mrf.mxu0
      %v712 = vadd.f32 %v518, %v711
      %v713 = vpop.f32.mrf.mxu0
      %714 = vmatprep.mubr.f32.mxu0 0.0
      %715 = vmatmul.mubr.f32.gmra.mxu0 %v577
      %v716 = vpop.f32.mrf.mxu0
      %v717 = vadd.f32 %v523, %v716
      %v718 = vpop.f32.mrf.mxu0
      %719 = vmatprep.mubr.f32.mxu0 0.0
      %720 = vmatmul.mubr.f32.gmra.mxu0 %v580
      %v721 = vpop.f32.mrf.mxu0
      %v722 = vadd.f32 %v528, %v721
      %v723 = vpop.f32.mrf.mxu0
      %724 = vmatprep.mubr.f32.mxu0 0.0
      %725 = vmatmul.mubr.f32.gmra.mxu0 %v583
      %v726 = vpop.f32.mrf.mxu0
      %v727 = vadd.f32 %v533, %v726
      %v728 = vpop.f32.mrf.mxu0
      %729 = vdwg.mxu0
      %v730 = vld [vmem:[%s4] sm:$0x1]
      %v732 = vlaneseq
      %v733 = vshrl.u32 %v732, 7
      %v734 = vsub.s32 0, %v733
      %v735 = vrot.slane %v730, %v734
      %v737 = vadd.f32 %v652, %v735
      %v738 = vadd.f32 %v657, %v735
      %v739 = vadd.f32 %v662, %v735
      %v740 = vadd.f32 %v667, %v735
      %v741 = vadd.f32 %v672, %v735
      %v742 = vadd.f32 %v677, %v735
      %v743 = vadd.f32 %v682, %v735
      %v744 = vadd.f32 %v687, %v735
      %v745 = vadd.f32 %v692, %v735
      %v746 = vadd.f32 %v697, %v735
      %v747 = vadd.f32 %v702, %v735
      %v748 = vadd.f32 %v707, %v735
      %v749 = vadd.f32 %v712, %v735
      %v750 = vadd.f32 %v717, %v735
      %v751 = vadd.f32 %v722, %v735
      %v752 = vadd.f32 %v727, %v735
      %v753 = vmax.f32 %v737, 0.0
      %v754 = vmax.f32 %v738, 0.0
      %v755 = vmax.f32 %v739, 0.0
      %v756 = vmax.f32 %v740, 0.0
      %v757 = vmax.f32 %v741, 0.0
      %v758 = vmax.f32 %v742, 0.0
      %v759 = vmax.f32 %v743, 0.0
      %v760 = vmax.f32 %v744, 0.0
      %v761 = vmax.f32 %v745, 0.0
      %v762 = vmax.f32 %v746, 0.0
      %v763 = vmax.f32 %v747, 0.0
      %v764 = vmax.f32 %v748, 0.0
      %v765 = vmax.f32 %v749, 0.0
      %v766 = vmax.f32 %v750, 0.0
      %v767 = vmax.f32 %v751, 0.0
      %v768 = vmax.f32 %v752, 0.0
      %v769 = vld [vmem:[%s5] sm:$0xff]
      %v770 = vld [vmem:[%s5 + $0x8] sm:$0xff]
      %v771 = vld [vmem:[%s5 + $0x10] sm:$0xff]
      %v772 = vld [vmem:[%s5 + $0x18] sm:$0xff]
      %v773 = vld [vmem:[%s5 + $0x20] sm:$0xff]
      %v774 = vld [vmem:[%s5 + $0x28] sm:$0xff]
      %v775 = vld [vmem:[%s5 + $0x30] sm:$0xff]
      %v776 = vld [vmem:[%s5 + $0x38] sm:$0xff]
      %v777 = vld [vmem:[%s6] sm:$0x1]
      %v779 = vlaneseq
      %v780 = vshrl.u32 %v779, 7
      %v781 = vsub.s32 0, %v780
      %v782 = vrot.slane %v777, %v781
      %vm784 = vcmask 523264
      %v786 = vsel %vm784, %v753, 0
      %v789 = vsel %vm784, %v754, 0
      %v792 = vsel %vm784, %v755, 0
      %v795 = vsel %vm784, %v756, 0
      %v798 = vsel %vm784, %v757, 0
      %v801 = vsel %vm784, %v758, 0
      %v804 = vsel %vm784, %v759, 0
      %v807 = vsel %vm784, %v760, 0
      %v810 = vsel %vm784, %v761, 0
      %v813 = vsel %vm784, %v762, 0
      %v816 = vsel %vm784, %v763, 0
      %v819 = vsel %vm784, %v764, 0
      %v822 = vsel %vm784, %v765, 0
      %v825 = vsel %vm784, %v766, 0
      %v828 = vsel %vm784, %v767, 0
      %v831 = vsel %vm784, %v768, 0
      %833 = vmatprep.subr.mxu0 0.0
      %834 = vmatpush1.msra.mxu0 0.0
      %835 = vmatprep.subr.mxu0 0.0
      %836 = vmatpush1.msra.mxu0 0.0
      %837 = vmatprep.subr.mxu0 0.0
      %838 = vmatpush1.msra.mxu0 0.0
      %839 = vmatprep.subr.mxu0 0.0
      %840 = vmatpush1.msra.mxu0 0.0
      %841 = vmatprep.subr.mxu0 0.0
      %842 = vmatpush1.msra.mxu0 0.0
      %843 = vmatprep.subr.mxu0 0.0
      %844 = vmatpush1.msra.mxu0 0.0
      %845 = vmatprep.subr.mxu0 0.0
      %846 = vmatpush1.msra.mxu0 0.0
      %847 = vmatprep.subr.mxu0 0.0
      %848 = vmatpush1.msra.mxu0 0.0
      %849 = vmatprep.subr.mxu0 0.0
      %850 = vmatpush1.msra.mxu0 %v776
      %851 = vmatprep.subr.mxu0 0.0
      %852 = vmatpush1.msra.mxu0 %v775
      %853 = vmatprep.subr.mxu0 0.0
      %854 = vmatpush1.msra.mxu0 %v774
      %855 = vmatprep.subr.mxu0 0.0
      %856 = vmatpush1.msra.mxu0 %v773
      %857 = vmatprep.subr.mxu0 0.0
      %858 = vmatpush1.msra.mxu0 %v772
      %859 = vmatprep.subr.mxu0 0.0
      %860 = vmatpush1.msra.mxu0 %v771
      %861 = vmatprep.subr.mxu0 0.0
      %862 = vmatpush1.msra.mxu0 %v770
      %863 = vmatprep.subr.mxu0 0.0
      %864 = vmatpush1.msra.mxu0 %v769
      %865 = vmatprep.subr.mxu0 0.0
      %866 = vmatpush2.msra.mxu0 0.0
      %867 = vmatprep.subr.mxu0 0.0
      %868 = vmatpush2.msra.mxu0 0.0
      %869 = vmatprep.subr.mxu0 0.0
      %870 = vmatpush2.msra.mxu0 0.0
      %871 = vmatprep.subr.mxu0 0.0
      %872 = vmatpush2.msra.mxu0 0.0
      %873 = vmatprep.subr.mxu0 0.0
      %874 = vmatpush2.msra.mxu0 0.0
      %875 = vmatprep.subr.mxu0 0.0
      %876 = vmatpush2.msra.mxu0 0.0
      %877 = vmatprep.subr.mxu0 0.0
      %878 = vmatpush2.msra.mxu0 0.0
      %879 = vmatprep.subr.mxu0 0.0
      %880 = vmatpush2.msra.mxu0 0.0
      %881 = vmatprep.subr.mxu0 0.0
      %882 = vmatpush2.msra.mxu0 0.0
      %883 = vmatprep.subr.mxu0 0.0
      %884 = vmatpush2.msra.mxu0 0.0
      %885 = vmatprep.subr.mxu0 0.0
      %886 = vmatpush2.msra.mxu0 0.0
      %887 = vmatprep.subr.mxu0 0.0
      %888 = vmatpush2.msra.mxu0 0.0
      %889 = vmatprep.subr.mxu0 0.0
      %890 = vmatpush2.msra.mxu0 0.0
      %891 = vmatprep.subr.mxu0 0.0
      %892 = vmatpush2.msra.mxu0 0.0
      %893 = vmatprep.subr.mxu0 0.0
      %894 = vmatpush2.msra.mxu0 0.0
      %895 = vmatprep.subr.mxu0 0.0
      %896 = vmatpush2.msra.mxu0 0.0
      %897 = vmatprep.mubr.f32.mxu0 0.0
      %898 = vmatmul.mubr.f32.gmra.mxu0 %v786
      %v899 = vpop.f32.mrf.mxu0
      %v900 = vadd.f32 %v782, %v899
      %v901 = vpop.f32.mrf.mxu0
      %902 = vmatprep.mubr.f32.mxu0 0.0
      %903 = vmatmul.mubr.f32.gmra.mxu0 %v789
      %v904 = vpop.f32.mrf.mxu0
      %v905 = vadd.f32 %v782, %v904
      %v906 = vpop.f32.mrf.mxu0
      %907 = vmatprep.mubr.f32.mxu0 0.0
      %908 = vmatmul.mubr.f32.gmra.mxu0 %v792
      %v909 = vpop.f32.mrf.mxu0
      %v910 = vadd.f32 %v782, %v909
      %v911 = vpop.f32.mrf.mxu0
      %912 = vmatprep.mubr.f32.mxu0 0.0
      %913 = vmatmul.mubr.f32.gmra.mxu0 %v795
      %v914 = vpop.f32.mrf.mxu0
      %v915 = vadd.f32 %v782, %v914
      %v916 = vpop.f32.mrf.mxu0
      %917 = vmatprep.mubr.f32.mxu0 0.0
      %918 = vmatmul.mubr.f32.gmra.mxu0 %v798
      %v919 = vpop.f32.mrf.mxu0
      %v920 = vadd.f32 %v782, %v919
      %v921 = vpop.f32.mrf.mxu0
      %922 = vmatprep.mubr.f32.mxu0 0.0
      %923 = vmatmul.mubr.f32.gmra.mxu0 %v801
      %v924 = vpop.f32.mrf.mxu0
      %v925 = vadd.f32 %v782, %v924
      %v926 = vpop.f32.mrf.mxu0
      %927 = vmatprep.mubr.f32.mxu0 0.0
      %928 = vmatmul.mubr.f32.gmra.mxu0 %v804
      %v929 = vpop.f32.mrf.mxu0
      %v930 = vadd.f32 %v782, %v929
      %v931 = vpop.f32.mrf.mxu0
      %932 = vmatprep.mubr.f32.mxu0 0.0
      %933 = vmatmul.mubr.f32.gmra.mxu0 %v807
      %v934 = vpop.f32.mrf.mxu0
      %v935 = vadd.f32 %v782, %v934
      %v936 = vpop.f32.mrf.mxu0
      %937 = vmatprep.mubr.f32.mxu0 0.0
      %938 = vmatmul.mubr.f32.gmra.mxu0 %v810
      %v939 = vpop.f32.mrf.mxu0
      %v940 = vadd.f32 %v782, %v939
      %v941 = vpop.f32.mrf.mxu0
      %942 = vmatprep.mubr.f32.mxu0 0.0
      %943 = vmatmul.mubr.f32.gmra.mxu0 %v813
      %v944 = vpop.f32.mrf.mxu0
      %v945 = vadd.f32 %v782, %v944
      %v946 = vpop.f32.mrf.mxu0
      %947 = vmatprep.mubr.f32.mxu0 0.0
      %948 = vmatmul.mubr.f32.gmra.mxu0 %v816
      %v949 = vpop.f32.mrf.mxu0
      %v950 = vadd.f32 %v782, %v949
      %v951 = vpop.f32.mrf.mxu0
      %952 = vmatprep.mubr.f32.mxu0 0.0
      %953 = vmatmul.mubr.f32.gmra.mxu0 %v819
      %v954 = vpop.f32.mrf.mxu0
      %v955 = vadd.f32 %v782, %v954
      %v956 = vpop.f32.mrf.mxu0
      %957 = vmatprep.mubr.f32.mxu0 0.0
      %958 = vmatmul.mubr.f32.gmra.mxu0 %v822
      %v959 = vpop.f32.mrf.mxu0
      %v960 = vadd.f32 %v782, %v959
      %v961 = vpop.f32.mrf.mxu0
      %962 = vmatprep.mubr.f32.mxu0 0.0
      %963 = vmatmul.mubr.f32.gmra.mxu0 %v825
      %v964 = vpop.f32.mrf.mxu0
      %v965 = vadd.f32 %v782, %v964
      %v966 = vpop.f32.mrf.mxu0
      %967 = vmatprep.mubr.f32.mxu0 0.0
      %968 = vmatmul.mubr.f32.gmra.mxu0 %v828
      %v969 = vpop.f32.mrf.mxu0
      %v970 = vadd.f32 %v782, %v969
      %v971 = vpop.f32.mrf.mxu0
      %972 = vmatprep.mubr.f32.mxu0 0.0
      %973 = vmatmul.mubr.f32.gmra.mxu0 %v831
      %v974 = vpop.f32.mrf.mxu0
      %v975 = vadd.f32 %v782, %v974
      %v976 = vpop.f32.mrf.mxu0
      %977 = vdwg.mxu0
      %v978 = vadd.f32 %v304, %v900
      %v979 = vadd.f32 %v305, %v905
      %v980 = vadd.f32 %v306, %v910
      %v981 = vadd.f32 %v307, %v915
      %v982 = vadd.f32 %v308, %v920
      %v983 = vadd.f32 %v309, %v925
      %v984 = vadd.f32 %v310, %v930
      %v985 = vadd.f32 %v311, %v935
      %v986 = vadd.f32 %v312, %v940
      %v987 = vadd.f32 %v313, %v945
      %v988 = vadd.f32 %v314, %v950
      %v989 = vadd.f32 %v315, %v955
      %v990 = vadd.f32 %v316, %v960
      %v991 = vadd.f32 %v317, %v965
      %v992 = vadd.f32 %v318, %v970
      %v993 = vadd.f32 %v319, %v975
      %994 = vst.msk [vmem:[%s302] sm:$0xff] %vm536, %v978
      %995 = vst.msk [vmem:[%s302 + $0x8] sm:$0xff] %vm536, %v979
      %996 = vst.msk [vmem:[%s302 + $0x10] sm:$0xff] %vm536, %v980
      %997 = vst.msk [vmem:[%s302 + $0x18] sm:$0xff] %vm536, %v981
      %998 = vst.msk [vmem:[%s302 + $0x20] sm:$0xff] %vm536, %v982
      %999 = vst.msk [vmem:[%s302 + $0x28] sm:$0xff] %vm536, %v983
      %1000 = vst.msk [vmem:[%s302 + $0x30] sm:$0xff] %vm536, %v984
      %1001 = vst.msk [vmem:[%s302 + $0x38] sm:$0xff] %vm536, %v985
      %1002 = vst.msk [vmem:[%s302 + $0x40] sm:$0xff] %vm536, %v986
      %1003 = vst.msk [vmem:[%s302 + $0x48] sm:$0xff] %vm536, %v987
      %1004 = vst.msk [vmem:[%s302 + $0x50] sm:$0xff] %vm536, %v988
      %1005 = vst.msk [vmem:[%s302 + $0x58] sm:$0xff] %vm536, %v989
      %1006 = vst.msk [vmem:[%s302 + $0x60] sm:$0xff] %vm536, %v990
      %1007 = vst.msk [vmem:[%s302 + $0x68] sm:$0xff] %vm536, %v991
      %1008 = vst.msk [vmem:[%s302 + $0x70] sm:$0xff] %vm536, %v992
      %1009 = vst.msk [vmem:[%s302 + $0x78] sm:$0xff] %vm536, %v993
      %s1010 = smul.u32 16, %s18
      %p1011 = scmp.lt.s32.totalorder %s1010, 31
      %s1012 = scalar_select %p1011, %s1010, 31
      %s1013 = smul.addr %s1012, 8
      %s1014 = scalar_lea.vmem %s7, %s1013
      // Predicated region
      $region49: #{tpu_custom_call.1} parent=47 // pred_check
        %p1015 = pneg %p193
      $region50: #{tpu_custom_call.1} parent=47 // pred_check_branch
        %1017 = sbr.rel (%p1015) target = $region52
      $region51: #{tpu_custom_call.1} parent=47 // pred_region
        %s1018 = smul.u32 16, %s18
      $region52: #{tpu_custom_call.1} parent=47 // pred_fallthru
        _
    $region48: #{tpu_custom_call.1} parent=5 // pred_fallthru
      _
    %p1019 = scmp.le.s32.totalorder 2, %s13
    // Predicated region
    $region53: #{tpu_custom_call.1} parent=5 // pred_check
      %p1020 = pneg %p1019
    $region54: #{tpu_custom_call.1} parent=5 // pred_check_branch
      %1022 = sbr.rel (%p1020) target = $region56
    $region55: #{tpu_custom_call.1} parent=5 // pred_region
      %s1023 = ssub.s32 %s13, 2
      // Predicated region
      $region57: #{tpu_custom_call.1} parent=55 // pred_check
        %p1024 = pneg %p199
      $region58: #{tpu_custom_call.1} parent=55 // pred_check_branch
        %1026 = sbr.rel (%p1024) target = $region60
      $region59: #{tpu_custom_call.1} parent=55 // pred_region
        %s1027 = smul.u32 16, %s19
        %p1028 = scmp.lt.s32.totalorder %s1027, 31
        %s1029 = scalar_select %p1028, %s1027, 31
        %s1030 = smul.addr %s1029, 8
        %s1031 = scalar_lea.vmem %s7, %s1030
      $region60: #{tpu_custom_call.1} parent=55 // pred_fallthru
        _
    $region56: #{tpu_custom_call.1} parent=5 // pred_fallthru
      _
  $region6: #{tpu_custom_call.1} parent=0 // loop_footer
    %s17 = sadd.s32 1, %s13
  $region7: #{tpu_custom_call.1} parent=0 // loop_footer_branch
    %12 = sbr.rel target = $region3
  $region8: #{tpu_custom_call.1} parent=0 // loop_exit
    _

</llo_original>
